<compile_context>
chip_gen: v7x
topology: tpu7x:2x2x1
jax: 0.10.0
libtpu: 0.0.40
codegen_flags: <defaults>
</compile_context>

<pallas_src>
from functools import partial

import jax
import jax.numpy as jnp
import numpy as np
from jax.experimental import pallas as pl
from jax.experimental.pallas import tpu as pltpu


def _up8(n):
    return ((n + 7) // 8) * 8


def _round_up(n, m):
    return ((n + m - 1) // m) * m


# ----------------------------------------------------------------------------
# Kernel: one batch tile (lanes = batch), both pathways fused block-diagonally.
# ----------------------------------------------------------------------------
def avm_kernel(x_ref, q_ref, w_ref, b_ref, out_ref, *, lay, mxu_dt):
    K0, D1, D2 = lay["K0"], lay["D1"], lay["D2"]
    rw1, rw2, rw3 = lay["r_w1"], lay["r_w2"], lay["r_w3"]
    rb1, rb2, rb3, rqw = lay["r_b1"], lay["r_b2"], lay["r_b3"], lay["r_qw"]

    x = x_ref[...]                               # (K0, TB)  mxu_dt: [x_prp^T ; x_hpi^T]
    qs = (q_ref[...] - 0.5) * 2.0                # (1, TB)   f32 (_prepare_quantiles scale)

    # Static views into the resident parameter slabs (zero-cost, 8-row aligned).
    w1 = w_ref[rw1:rw1 + D1, 0:K0]               # block-diag [w1p^T 0; 0 w1h^T]
    w2 = w_ref[rw2:rw2 + D2, 0:D1]               # block-diag [w2p^T 0; 0 w2h^T]
    w3 = w_ref[rw3:rw3 + 2, 0:D2]                # row0=[w3pf^T|w3hf^T], row1=[0|w3hf^T]
    b1 = b_ref[rb1:rb1 + D1, :]                  # (D1, 1) f32, broadcasts over lanes
    b2 = b_ref[rb2:rb2 + D2, :]
    b3 = b_ref[rb3:rb3 + 2, :]                   # [b3p+b3h ; b3h]
    qw = b_ref[rqw:rqw + 2, :]                   # [|w3pq|+|w3hq| ; |w3hq|]  (MonotonicDense)

    # Weight-stationary GEMM chain, f32 accumulation, f32 epilogue.
    h = jnp.dot(w1, x, preferred_element_type=jnp.float32)      # (D1, TB)
    h = jnp.maximum(h + b1, 0.0).astype(mxu_dt)                  # [relu prp ; relu hpi]
    g = jnp.dot(w2, h, preferred_element_type=jnp.float32)      # (D2, TB)
    g = jnp.maximum(g + b2, 0.0).astype(mxu_dt)
    y = jnp.dot(w3, g, preferred_element_type=jnp.float32)      # (2, TB)
    out_ref[...] = y + qw * qs + b3              # row 0 = out, row 1 = hpi (lane-dense)


# ----------------------------------------------------------------------------
# Parameter packing: transposed block-diagonal weight slab (MXU dtype) + f32
# bias/epilogue slab.  Packed once; the pallas_call keeps them VMEM-resident.
# ----------------------------------------------------------------------------
def pack_params(params, input_size_prp, input_size_hpi, hidden_dims, *, use_bf16=True):
    P, H = input_size_prp, input_size_hpi
    h0, h1 = hidden_dims
    K0, D1, D2 = P + H, 2 * h0, 2 * h1

    # ---- weight slab: W^T sub-blocks, 8-row-aligned starts, 128-lane width ----
    r_w1 = 0
    r_w2 = _up8(r_w1 + D1)
    r_w3 = _up8(r_w2 + D2)
    Rw = _up8(r_w3 + 2)
    Cw = _round_up(max(K0, D1, D2), 128)

    w = jnp.zeros((Rw, Cw), jnp.float32)
    # layer 1 (block-diagonal, transposed)
    w = w.at[r_w1:r_w1 + h0, 0:P].set(params["w1p"].T)
    w = w.at[r_w1 + h0:r_w1 + D1, P:K0].set(params["w1h"].T)
    # layer 2 (block-diagonal, transposed)
    w = w.at[r_w2:r_w2 + h1, 0:h0].set(params["w2p"].T)
    w = w.at[r_w2 + h1:r_w2 + D2, h0:D1].set(params["w2h"].T)
    # fused head (transposed): row 0 -> y_prp + y_hpi, row 1 -> y_hpi
    w = w.at[r_w3, 0:h1].set(params["w3pf"].reshape(-1))
    w = w.at[r_w3, h1:D2].set(params["w3hf"].reshape(-1))
    w = w.at[r_w3 + 1, h1:D2].set(params["w3hf"].reshape(-1))
    wslab = w.astype(jnp.bfloat16 if use_bf16 else jnp.float32)

    # ---- bias / quantile-epilogue slab: f32 column vectors ----
    r_b1 = 0
    r_b2 = _up8(r_b1 + D1)
    r_b3 = _up8(r_b2 + D2)
    r_qw = _up8(r_b3 + 2)
    Rb = _up8(r_qw + 2)
    b = jnp.zeros((Rb, 1), jnp.float32)
    b = b.at[r_b1:r_b1 + h0, 0].set(params["b1p"].reshape(-1))
    b = b.at[r_b1 + h0:r_b1 + D1, 0].set(params["b1h"].reshape(-1))
    b = b.at[r_b2:r_b2 + h1, 0].set(params["b2p"].reshape(-1))
    b = b.at[r_b2 + h1:r_b2 + D2, 0].set(params["b2h"].reshape(-1))
    b = b.at[r_b3, 0].set(jnp.squeeze(params["b3p"] + params["b3h"]))
    b = b.at[r_b3 + 1, 0].set(jnp.squeeze(params["b3h"]))
    aqp = jnp.abs(jnp.squeeze(params["w3pq"]))   # MonotonicDense |w| on the quantile input
    aqh = jnp.abs(jnp.squeeze(params["w3hq"]))
    b = b.at[r_qw, 0].set(aqp + aqh)
    b = b.at[r_qw + 1, 0].set(aqh)
    bslab = b

    layout = dict(K0=K0, D1=D1, D2=D2, Rw=Rw, Cw=Cw, Rb=Rb,
                  r_w1=r_w1, r_w2=r_w2, r_w3=r_w3,
                  r_b1=r_b1, r_b2=r_b2, r_b3=r_b3, r_qw=r_qw)
    return wslab, bslab, layout


# ----------------------------------------------------------------------------
# Wrapper: batch-in-lanes pallas_call with VMEM-resident weights.
# ----------------------------------------------------------------------------
def neural_avm_forward(x, quantiles, wslab, bslab, layout, *, batch_tile=8192):
    """x: [B, P+H] features only (NO quantile column), quantiles: [B].

    Returns (out, hpi), each [B, 1] f32.  Matches `forward(x, quantiles=q,
    return_hpi=True)` of the module in eval mode.
    """
    B = x.shape[0]
    K0, Rw, Cw, Rb = layout["K0"], layout["Rw"], layout["Cw"], layout["Rb"]
    if x.shape[1] != K0:
        raise ValueError(f"x must have {K0} feature columns (got {x.shape[1]}); "
                         "do not append the quantile column — pass quantiles separately.")

    mxu_dt = wslab.dtype
    # Feature-major (batch-in-lanes) operands. The transpose fuses with the
    # bf16 cast into a single XLA op; quantiles stay f32 for the epilogue.
    x_t = jnp.asarray(x, jnp.float32).T.astype(mxu_dt)            # (K0, B)
    q_t = jnp.asarray(quantiles, jnp.float32).reshape(1, B)       # (1, B)

    # Batch-tile selection: lane-dim blocks must be a multiple of 128 unless
    # they span the whole batch; ensure >=2 grid steps when B >= 256 so the
    # "parallel" batch axis can shard across both v7x TensorCores.
    if B <= batch_tile:
        TB = B if B < 256 else _round_up(pl.cdiv(B, 2), 128)
    else:
        TB = max(128, (batch_tile // 128) * 128)
    grid = (pl.cdiv(B, TB),)

    D1, D2 = layout["D1"], layout["D2"]
    cost = pl.CostEstimate(
        flops=2 * B * (K0 * D1 + D1 * D2 + D2 * 2),
        transcendentals=0,
        bytes_accessed=(x_t.size * jnp.dtype(mxu_dt).itemsize + q_t.size * 4
                        + wslab.size * jnp.dtype(mxu_dt).itemsize + bslab.size * 4
                        + 2 * B * 4),
    )

    kernel = partial(avm_kernel, lay=layout, mxu_dt=mxu_dt)
    y = pl.pallas_call(
        kernel,
        grid=grid,
        in_specs=[
            pl.BlockSpec((K0, TB), lambda i: (0, i)),   # x^T: streamed batch-in-lanes tiles
            pl.BlockSpec((1, TB), lambda i: (0, i)),    # quantiles (epilogue only)
            pl.BlockSpec((Rw, Cw), lambda i: (0, 0)),   # weight slab: VMEM-resident
            pl.BlockSpec((Rb, 1), lambda i: (0, 0)),    # bias/epilogue slab: VMEM-resident
        ],
        out_specs=pl.BlockSpec((2, TB), lambda i: (0, i)),  # lane-dense (out|hpi) rows
        out_shape=jax.ShapeDtypeStruct((2, B), jnp.float32),
        compiler_params=pltpu.CompilerParams(
            dimension_semantics=("parallel",),          # megacore-shard the batch on v7x
            vmem_limit_bytes=32 * 1024 * 1024,          # ~6 MiB/tile @ TB=8192; safe on 64 MiB v7x
        ),
        cost_estimate=cost,
    )(x_t, q_t, wslab, bslab)
    return y[0].reshape(B, 1), y[1].reshape(B, 1)


# ----------------------------------------------------------------------------
# Pure-JAX reference (mirrors the PyTorch semantics) for verification.
# ----------------------------------------------------------------------------
def reference_forward(x, quantiles, params, input_size_prp, input_size_hpi):
    B = x.shape[0]
    x_prp = x[:, :input_size_prp]
    x_hpi = x[:, input_size_prp:input_size_prp + input_size_hpi]
    q = ((quantiles.reshape(B, 1) - 0.5) * 2.0).astype(jnp.float32)

    def pathway(xi, w1, b1, w2, b2, w3f, w3q, b3):
        h = jnp.maximum(xi @ w1 + b1, 0.0)
        h = jnp.maximum(h @ w2 + b2, 0.0)
        return h @ w3f + q * jnp.abs(w3q) + b3   # MonotonicDense on [h, q]

    y_prp = pathway(x_prp, params["w1p"], params["b1p"], params["w2p"],
                    params["b2p"], params["w3pf"], params["w3pq"], params["b3p"])
    y_hpi = pathway(x_hpi, params["w1h"], params["b1h"], params["w2h"],
                    params["b2h"], params["w3hf"], params["w3hq"], params["b3h"])
    return y_prp + y_hpi, y_hpi


# ----------------------------------------------------------------------------
# Deterministic synthetic parameters / inputs.
# ----------------------------------------------------------------------------
def make_params(key, input_size_prp, input_size_hpi, hidden_dims):
    h0, h1 = hidden_dims
    ks = jax.random.split(key, 16)

    def w(k, shape):
        return (0.1 * jax.random.normal(k, shape)).astype(jnp.float32)

    return {
        # property pathway (weights stored [in, out])
        "w1p": w(ks[0], (input_size_prp, h0)), "b1p": w(ks[1], (1, h0)),
        "w2p": w(ks[2], (h0, h1)),             "b2p": w(ks[3], (1, h1)),
        "w3pf": w(ks[4], (h1, 1)),             "w3pq": w(ks[5], (1, 1)),
        "b3p": w(ks[6], (1, 1)),
        # hpi pathway
        "w1h": w(ks[7], (input_size_hpi, h0)), "b1h": w(ks[8], (1, h0)),
        "w2h": w(ks[9], (h0, h1)),             "b2h": w(ks[10], (1, h1)),
        "w3hf": w(ks[11], (h1, 1)),            "w3hq": w(ks[12], (1, 1)),
        "b3h": w(ks[13], (1, 1)),
    }


if __name__ == "__main__":
    # Config consistent with the module: input_size_prp=12, input_size_hpi=4,
    # hidden_dims=[32, 16].
    INPUT_SIZE_PRP = 12
    INPUT_SIZE_HPI = 4
    HIDDEN_DIMS = [32, 16]

    key = jax.random.PRNGKey(0)
    k_x, k_q, k_p, k_x2, k_q2 = jax.random.split(key, 5)
    params = make_params(k_p, INPUT_SIZE_PRP, INPUT_SIZE_HPI, HIDDEN_DIMS)

    # f32 slabs (tight-tolerance path) and bf16 slabs (default fast MXU path).
    wslab_f32, bslab_f32, layout = pack_params(
        params, INPUT_SIZE_PRP, INPUT_SIZE_HPI, HIDDEN_DIMS, use_bf16=False)
    wslab_bf16, bslab_bf16, _ = pack_params(
        params, INPUT_SIZE_PRP, INPUT_SIZE_HPI, HIDDEN_DIMS, use_bf16=True)

    # --- small batch, single tile, f32 MXU path (tight check) ---
    B = 8
    x = jax.random.normal(k_x, (B, INPUT_SIZE_PRP + INPUT_SIZE_HPI), jnp.float32)
    quantiles = jax.random.uniform(k_q, (B,), jnp.float32)   # like torch.rand(B)

    out, hpi = neural_avm_forward(x, quantiles, wslab_f32, bslab_f32, layout)
    out, hpi = jax.block_until_ready(out), jax.block_until_ready(hpi)
    ref_out, ref_hpi = reference_forward(x, quantiles, params,
                                         INPUT_SIZE_PRP, INPUT_SIZE_HPI)
    np.testing.assert_allclose(np.asarray(out), np.asarray(ref_out), rtol=1e-5, atol=1e-5)
    np.testing.assert_allclose(np.asarray(hpi), np.asarray(ref_hpi), rtol=1e-5, atol=1e-5)

    # --- larger batch exercising the batch grid + partial last tile (f32) ---
    B2 = 300
    x2 = jax.random.normal(k_x2, (B2, INPUT_SIZE_PRP + INPUT_SIZE_HPI), jnp.float32)
    q2 = jax.random.uniform(k_q2, (B2,), jnp.float32)
    out2, hpi2 = neural_avm_forward(x2, q2, wslab_f32, bslab_f32, layout, batch_tile=128)
    out2, hpi2 = jax.block_until_ready(out2), jax.block_until_ready(hpi2)
    ref_out2, ref_hpi2 = reference_forward(x2, q2, params,
                                           INPUT_SIZE_PRP, INPUT_SIZE_HPI)
    np.testing.assert_allclose(np.asarray(out2), np.asarray(ref_out2), rtol=1e-5, atol=1e-5)
    np.testing.assert_allclose(np.asarray(hpi2), np.asarray(ref_hpi2), rtol=1e-5, atol=1e-5)

    # --- default bf16 MXU-operand path (v5e/v6e/v7x fast path), looser tolerance ---
    out_bf, hpi_bf = neural_avm_forward(x2, q2, wslab_bf16, bslab_bf16, layout)
    out_bf, hpi_bf = jax.block_until_ready(out_bf), jax.block_until_ready(hpi_bf)
    np.testing.assert_allclose(np.asarray(out_bf), np.asarray(ref_out2),
                               rtol=1e-1, atol=5e-2)
    np.testing.assert_allclose(np.asarray(hpi_bf), np.asarray(ref_hpi2),
                               rtol=1e-1, atol=5e-2)

    # TODO(synk): dict-input path (nn.Embedding / OrdinalEmbedding lookups) and
    # training-time dropout / quantile-loss fitting are out of scope for this
    # eval-mode tensor-input forward kernel.
    print("KERNEL_OK")
</pallas_src>

<mosaic_0001>
module attributes {stable_mosaic.version = 11 : i64} {
  func.func @avm_kernel(%arg0: i32, %arg1: memref<16x8xf32, #tpu.memory_space<vmem>>, %arg2: memref<1x8xf32, #tpu.memory_space<vmem>>, %arg3: memref<104x128xf32, #tpu.memory_space<vmem>>, %arg4: memref<112x1xf32, #tpu.memory_space<vmem>>, %arg5: memref<2x8xf32, #tpu.memory_space<vmem>>) attributes {dimension_semantics = [#tpu.dimension_semantics<parallel>], iteration_bounds = array<i64: 1>, scalar_prefetch = 0 : i64, scratch_operands = 0 : i64, tpu.core_type = #tpu.core_type<tc>, window_params = [{transform_indices = @transform_0, window_bounds = array<i64: 16, 8>}, {transform_indices = @transform_1, window_bounds = array<i64: 1, 8>}, {pipeline_mode = #tpu.pipeline_mode<synchronous>, transform_indices = @transform_2, window_bounds = array<i64: 104, 128>}, {pipeline_mode = #tpu.pipeline_mode<synchronous>, transform_indices = @transform_3, window_bounds = array<i64: 112, 1>}, {transform_indices = @transform_4, window_bounds = array<i64: 2, 8>}]} {
    %c0 = arith.constant 0 : index
    %c0_0 = arith.constant 0 : index
    %0 = vector.load %arg1[%c0, %c0_0] : memref<16x8xf32, #tpu.memory_space<vmem>>, vector<16x8xf32>
    %c0_1 = arith.constant 0 : index
    %c0_2 = arith.constant 0 : index
    %1 = vector.load %arg2[%c0_1, %c0_2] : memref<1x8xf32, #tpu.memory_space<vmem>>, vector<1x8xf32>
    %cst = arith.constant 5.000000e-01 : f32
    %2 = vector.broadcast %cst : f32 to vector<1x8xf32>
    %3 = arith.subf %1, %2 : vector<1x8xf32>
    %cst_3 = arith.constant 2.000000e+00 : f32
    %4 = vector.broadcast %cst_3 : f32 to vector<1x8xf32>
    %5 = arith.mulf %3, %4 : vector<1x8xf32>
    %c0_4 = arith.constant 0 : index
    %c0_5 = arith.constant 0 : index
    %6 = vector.load %arg3[%c0_4, %c0_5] : memref<104x128xf32, #tpu.memory_space<vmem>>, vector<64x16xf32>
    %c64 = arith.constant 64 : index
    %c0_6 = arith.constant 0 : index
    %7 = vector.load %arg3[%c64, %c0_6] : memref<104x128xf32, #tpu.memory_space<vmem>>, vector<32x64xf32>
    %c96 = arith.constant 96 : index
    %c0_7 = arith.constant 0 : index
    %8 = vector.load %arg3[%c96, %c0_7] : memref<104x128xf32, #tpu.memory_space<vmem>>, vector<2x32xf32>
    %c0_8 = arith.constant 0 : index
    %c0_9 = arith.constant 0 : index
    %9 = vector.load %arg4[%c0_8, %c0_9] : memref<112x1xf32, #tpu.memory_space<vmem>>, vector<64x1xf32>
    %c64_10 = arith.constant 64 : index
    %c0_11 = arith.constant 0 : index
    %10 = vector.load %arg4[%c64_10, %c0_11] : memref<112x1xf32, #tpu.memory_space<vmem>>, vector<32x1xf32>
    %c96_12 = arith.constant 96 : index
    %c0_13 = arith.constant 0 : index
    %11 = vector.load %arg4[%c96_12, %c0_13] : memref<112x1xf32, #tpu.memory_space<vmem>>, vector<2x1xf32>
    %c104 = arith.constant 104 : index
    %c0_14 = arith.constant 0 : index
    %12 = vector.load %arg4[%c104, %c0_14] : memref<112x1xf32, #tpu.memory_space<vmem>>, vector<2x1xf32>
    %cst_15 = arith.constant dense<0.000000e+00> : vector<64x8xf32>
    %13 = tpu.matmul %6, %0, %cst_15 {dimension_numbers = #tpu.dot_dimension_numbers<[1], [0], [0], [1], [0, 0, 1, 1], [], []>} : vector<64x16xf32>, vector<16x8xf32>, vector<64x8xf32> -> vector<64x8xf32>
    %14 = vector.broadcast %9 : vector<64x1xf32> to vector<64x8xf32>
    %15 = arith.addf %13, %14 : vector<64x8xf32>
    %cst_16 = arith.constant 0.000000e+00 : f32
    %16 = vector.broadcast %cst_16 : f32 to vector<64x8xf32>
    %17 = arith.maximumf %15, %16 : vector<64x8xf32>
    %cst_17 = arith.constant dense<0.000000e+00> : vector<32x8xf32>
    %18 = tpu.matmul %7, %17, %cst_17 {dimension_numbers = #tpu.dot_dimension_numbers<[1], [0], [0], [1], [0, 0, 1, 1], [], []>} : vector<32x64xf32>, vector<64x8xf32>, vector<32x8xf32> -> vector<32x8xf32>
    %19 = vector.broadcast %10 : vector<32x1xf32> to vector<32x8xf32>
    %20 = arith.addf %18, %19 : vector<32x8xf32>
    %cst_18 = arith.constant 0.000000e+00 : f32
    %21 = vector.broadcast %cst_18 : f32 to vector<32x8xf32>
    %22 = arith.maximumf %20, %21 : vector<32x8xf32>
    %cst_19 = arith.constant dense<0.000000e+00> : vector<2x8xf32>
    %23 = tpu.matmul %8, %22, %cst_19 {dimension_numbers = #tpu.dot_dimension_numbers<[1], [0], [0], [1], [0, 0, 1, 1], [], []>} : vector<2x32xf32>, vector<32x8xf32>, vector<2x8xf32> -> vector<2x8xf32>
    %24 = vector.broadcast %12 : vector<2x1xf32> to vector<2x8xf32>
    %25 = vector.broadcast %5 : vector<1x8xf32> to vector<2x8xf32>
    %26 = arith.mulf %24, %25 : vector<2x8xf32>
    %27 = arith.addf %23, %26 : vector<2x8xf32>
    %28 = vector.broadcast %11 : vector<2x1xf32> to vector<2x8xf32>
    %29 = arith.addf %27, %28 : vector<2x8xf32>
    %c0_20 = arith.constant 0 : index
    %c0_21 = arith.constant 0 : index
    %30 = vector.load %arg5[%c0_20, %c0_21] : memref<2x8xf32, #tpu.memory_space<vmem>>, vector<2x8xf32>
    tpu.vector_store %arg5[%c0_20, %c0_21], %29 {strides = array<i32>} : memref<2x8xf32, #tpu.memory_space<vmem>>, vector<2x8xf32>,
    return
  }
  func.func @transform_0(%arg0: i32) -> (i32, i32) {
    %c0_i32 = arith.constant 0 : i32
    %c0_i32_0 = arith.constant 0 : i32
    return %c0_i32, %arg0 : i32, i32
  }
  func.func @transform_1(%arg0: i32) -> (i32, i32) {
    %c0_i32 = arith.constant 0 : i32
    %c0_i32_0 = arith.constant 0 : i32
    return %c0_i32, %arg0 : i32, i32
  }
  func.func @transform_2(%arg0: i32) -> (i32, i32) {
    %c0_i32 = arith.constant 0 : i32
    %c0_i32_0 = arith.constant 0 : i32
    %c0_i32_1 = arith.constant 0 : i32
    return %c0_i32, %c0_i32_0 : i32, i32
  }
  func.func @transform_3(%arg0: i32) -> (i32, i32) {
    %c0_i32 = arith.constant 0 : i32
    %c0_i32_0 = arith.constant 0 : i32
    %c0_i32_1 = arith.constant 0 : i32
    return %c0_i32, %c0_i32_0 : i32, i32
  }
  func.func @transform_4(%arg0: i32) -> (i32, i32) {
    %c0_i32 = arith.constant 0 : i32
    %c0_i32_0 = arith.constant 0 : i32
    return %c0_i32, %arg0 : i32, i32
  }
}

</mosaic_0001>

<llo_original>
// kernel: tpu_custom_call.1
$region0: #{tpu_custom_call.1}
  #allocation0 [shape = 'u32[]', space=smem, size = 0x4, offset = 0x4, fixed_abs, tag = 'smem constant byte address 0x4 - core index']
  #allocation1 [shape = 'u32[144,128]{1,0:T(1,128)}', space=vmem, size = 0x12000, scoped, tag = 'internal scratch']
  %s0 = inlined_call_operand.vmem [shape: f32[16,8], index: 0, kind: input, shape index: {}]
  %s1 = inlined_call_operand.vmem [shape: f32[1,8], index: 1, kind: input, shape index: {}]
  %s2 = inlined_call_operand.vmem [shape: f32[104,128], index: 2, kind: input, shape index: {}]
  %s3 = inlined_call_operand.vmem [shape: f32[112,1], index: 3, kind: input, shape index: {}]
  %s4 = inlined_call_operand.hbm [shape: f32[2,8], index: 4, kind: output, shape index: {}]
  %s5 = sld [smem:[#allocation0]]
  $region26: #{tpu_custom_call.1} parent=0
    _
  %s7 = ssub.s32 1, %s5
  %s8 = scalar_select 0, %s7, %s5
  $region1: #{tpu_custom_call.1} parent=0
    #allocation2 [shape = 'u8[1024]{0}', space=vmem, size = 0x400, scoped, tag = 'output window, operand 0, single buffered']
    #allocation3 [shape = 's32[1]{0}', space=sflag, size = 0x4, scoped, tag = 'scoped memory for tpu_custom_call.1']
    %9 = vsyncpa [#allocation3], 0
    // Predicated region
    $region2: #{tpu_custom_call.1} parent=1 // pred_check
      _
    $region3: #{tpu_custom_call.1} parent=1 // pred_check_branch
      %11 = sbr.rel (0) target = $region5
    $region4: #{tpu_custom_call.1} parent=1 // pred_region
      _
    $region5: #{tpu_custom_call.1} parent=1 // pred_fallthru
      _
    // Predicated region
    $region6: #{tpu_custom_call.1} parent=1 // pred_check
      _
    $region7: #{tpu_custom_call.1} parent=1 // pred_check_branch
      %13 = sbr.rel (0) target = $region9
    $region8: #{tpu_custom_call.1} parent=1 // pred_region
      _
    $region9: #{tpu_custom_call.1} parent=1 // pred_fallthru
      _
    // Predicated region
    $region10: #{tpu_custom_call.1} parent=1 // pred_check
      _
    $region11: #{tpu_custom_call.1} parent=1 // pred_check_branch
      %15 = sbr.rel (0) target = $region13
    $region12: #{tpu_custom_call.1} parent=1 // pred_region
      _
    $region13: #{tpu_custom_call.1} parent=1 // pred_fallthru
      _
    // Predicated region
    $region14: #{tpu_custom_call.1} parent=1 // pred_check
      _
    $region15: #{tpu_custom_call.1} parent=1 // pred_check_branch
      %17 = sbr.rel (0) target = $region17
    $region16: #{tpu_custom_call.1} parent=1 // pred_region
      _
    $region17: #{tpu_custom_call.1} parent=1 // pred_fallthru
      _
    %v18 = vld [vmem:[%s0] sm:$0xff]
    %v19 = vld [vmem:[%s0 + $0x8] sm:$0xff]
    %v20 = vld [vmem:[%s1] sm:$0x1]
    %v21 = vsub.f32 %v20, 0.5
    %v22 = vmul.f32 %v21, 2.0
    %v23 = vld [vmem:[%s2] sm:$0xff]
    %v24 = vld [vmem:[%s2 + $0x8] sm:$0xff]
    %v25 = vld [vmem:[%s2 + $0x10] sm:$0xff]
    %v26 = vld [vmem:[%s2 + $0x18] sm:$0xff]
    %v27 = vld [vmem:[%s2 + $0x20] sm:$0xff]
    %v28 = vld [vmem:[%s2 + $0x28] sm:$0xff]
    %v29 = vld [vmem:[%s2 + $0x30] sm:$0xff]
    %v30 = vld [vmem:[%s2 + $0x38] sm:$0xff]
    %v31 = vld [vmem:[%s2 + $0x40] sm:$0xff]
    %v32 = vld [vmem:[%s2 + $0x48] sm:$0xff]
    %v33 = vld [vmem:[%s2 + $0x50] sm:$0xff]
    %v34 = vld [vmem:[%s2 + $0x58] sm:$0xff]
    %v35 = vld [vmem:[%s2 + $0x60] sm:$0x3]
    %v36 = vld [vmem:[%s3] sm:$0xff]
    %v37 = vld [vmem:[%s3 + $0x8] sm:$0xff]
    %v38 = vld [vmem:[%s3 + $0x10] sm:$0xff]
    %v39 = vld [vmem:[%s3 + $0x18] sm:$0xff]
    %v40 = vld [vmem:[%s3 + $0x20] sm:$0xff]
    %v41 = vld [vmem:[%s3 + $0x28] sm:$0xff]
    %v42 = vld [vmem:[%s3 + $0x30] sm:$0xff]
    %v43 = vld [vmem:[%s3 + $0x38] sm:$0xff]
    %v44 = vld [vmem:[%s3 + $0x40] sm:$0xff]
    %v45 = vld [vmem:[%s3 + $0x48] sm:$0xff]
    %v46 = vld [vmem:[%s3 + $0x50] sm:$0xff]
    %v47 = vld [vmem:[%s3 + $0x58] sm:$0xff]
    %v48 = vld [vmem:[%s3 + $0x60] sm:$0x3]
    %v49 = vld [vmem:[%s3 + $0x68] sm:$0x3]
    %51 = vset.pattern.permute.xlu0 0
    %52 = vperm.xlu0 %51, %v36
    %v53 = vpop.permute.xlu0 %52
    %56 = vset.pattern.permute.xlu0 0
    %57 = vperm.xlu0 %56, %v37
    %v58 = vpop.permute.xlu0 %57
    %61 = vset.pattern.permute.xlu0 0
    %62 = vperm.xlu0 %61, %v38
    %v63 = vpop.permute.xlu0 %62
    %66 = vset.pattern.permute.xlu0 0
    %67 = vperm.xlu0 %66, %v39
    %v68 = vpop.permute.xlu0 %67
    %71 = vset.pattern.permute.xlu0 0
    %72 = vperm.xlu0 %71, %v40
    %v73 = vpop.permute.xlu0 %72
    %76 = vset.pattern.permute.xlu0 0
    %77 = vperm.xlu0 %76, %v41
    %v78 = vpop.permute.xlu0 %77
    %81 = vset.pattern.permute.xlu0 0
    %82 = vperm.xlu0 %81, %v42
    %v83 = vpop.permute.xlu0 %82
    %86 = vset.pattern.permute.xlu0 0
    %87 = vperm.xlu0 %86, %v43
    %v88 = vpop.permute.xlu0 %87
    %vm90 = vcmask 130048
    %v92 = vsel %vm90, %v23, 0
    %v95 = vsel %vm90, %v24, 0
    %v98 = vsel %vm90, %v25, 0
    %v101 = vsel %vm90, %v26, 0
    %v104 = vsel %vm90, %v27, 0
    %v107 = vsel %vm90, %v28, 0
    %v110 = vsel %vm90, %v29, 0
    %v113 = vsel %vm90, %v30, 0
    %115 = vmatprep.subr.mxu0 0.0
    %116 = vmatpush1.msra.mxu0 %v18
    %117 = vmatprep.subr.mxu0 0.0
    %118 = vmatpush1.msra.mxu0 %v19
    %119 = vmatprep.subr.mxu0 0.0
    %120 = vmatpush1.msra.mxu0 0.0
    %121 = vmatprep.subr.mxu0 0.0
    %122 = vmatpush1.msra.mxu0 0.0
    %123 = vmatprep.subr.mxu0 0.0
    %124 = vmatpush1.msra.mxu0 0.0
    %125 = vmatprep.subr.mxu0 0.0
    %126 = vmatpush1.msra.mxu0 0.0
    %127 = vmatprep.subr.mxu0 0.0
    %128 = vmatpush1.msra.mxu0 0.0
    %129 = vmatprep.subr.mxu0 0.0
    %130 = vmatpush1.msra.mxu0 0.0
    %131 = vmatprep.subr.mxu0 0.0
    %132 = vmatpush1.msra.mxu0 0.0
    %133 = vmatprep.subr.mxu0 0.0
    %134 = vmatpush1.msra.mxu0 0.0
    %135 = vmatprep.subr.mxu0 0.0
    %136 = vmatpush1.msra.mxu0 0.0
    %137 = vmatprep.subr.mxu0 0.0
    %138 = vmatpush1.msra.mxu0 0.0
    %139 = vmatprep.subr.mxu0 0.0
    %140 = vmatpush1.msra.mxu0 0.0
    %141 = vmatprep.subr.mxu0 0.0
    %142 = vmatpush1.msra.mxu0 0.0
    %143 = vmatprep.subr.mxu0 0.0
    %144 = vmatpush1.msra.mxu0 0.0
    %145 = vmatprep.subr.mxu0 0.0
    %146 = vmatpush1.msra.mxu0 0.0
    %147 = vmatprep.subr.mxu0 0.0
    %148 = vmatpush1.msra.mxu0 0.0
    %149 = vmatprep.subr.mxu0 0.0
    %150 = vmatpush1.msra.mxu0 0.0
    %151 = vmatprep.subr.mxu0 0.0
    %152 = vmatpush1.msra.mxu0 0.0
    %153 = vmatprep.subr.mxu0 0.0
    %154 = vmatpush1.msra.mxu0 0.0
    %155 = vmatprep.subr.mxu0 0.0
    %156 = vmatpush1.msra.mxu0 0.0
    %157 = vmatprep.subr.mxu0 0.0
    %158 = vmatpush1.msra.mxu0 0.0
    %159 = vmatprep.subr.mxu0 0.0
    %160 = vmatpush1.msra.mxu0 0.0
    %161 = vmatprep.subr.mxu0 0.0
    %162 = vmatpush1.msra.mxu0 0.0
    %163 = vmatprep.subr.mxu0 0.0
    %164 = vmatpush1.msra.mxu0 0.0
    %165 = vmatprep.subr.mxu0 0.0
    %166 = vmatpush1.msra.mxu0 0.0
    %167 = vmatprep.subr.mxu0 0.0
    %168 = vmatpush1.msra.mxu0 0.0
    %169 = vmatprep.subr.mxu0 0.0
    %170 = vmatpush1.msra.mxu0 0.0
    %171 = vmatprep.subr.mxu0 0.0
    %172 = vmatpush1.msra.mxu0 0.0
    %173 = vmatprep.subr.mxu0 0.0
    %174 = vmatpush1.msra.mxu0 0.0
    %175 = vmatprep.subr.mxu0 0.0
    %176 = vmatpush1.msra.mxu0 0.0
    %177 = vmatprep.subr.mxu0 0.0
    %178 = vmatpush1.msra.mxu0 0.0
    %179 = vmatprep.mubr.f32.mxu0 0.0
    %180 = vmatmul.mubr.f32.gmra.mrb[0].mxu0 %v92
    %v181 = vpop.f32.mrb[0].mxu0
    %v182 = vadd.f32 %v53, %v181
    %v183 = vpop.f32.mrb[0].mxu0
    %184 = vmatprep.mubr.f32.mxu0 0.0
    %185 = vmatmul.mubr.f32.gmra.mrb[0].mxu0 %v95
    %v186 = vpop.f32.mrb[0].mxu0
    %v187 = vadd.f32 %v58, %v186
    %v188 = vpop.f32.mrb[0].mxu0
    %189 = vmatprep.mubr.f32.mxu0 0.0
    %190 = vmatmul.mubr.f32.gmra.mrb[0].mxu0 %v98
    %v191 = vpop.f32.mrb[0].mxu0
    %v192 = vadd.f32 %v63, %v191
    %v193 = vpop.f32.mrb[0].mxu0
    %194 = vmatprep.mubr.f32.mxu0 0.0
    %195 = vmatmul.mubr.f32.gmra.mrb[0].mxu0 %v101
    %v196 = vpop.f32.mrb[0].mxu0
    %v197 = vadd.f32 %v68, %v196
    %v198 = vpop.f32.mrb[0].mxu0
    %199 = vmatprep.mubr.f32.mxu0 0.0
    %200 = vmatmul.mubr.f32.gmra.mrb[0].mxu0 %v104
    %v201 = vpop.f32.mrb[0].mxu0
    %v202 = vadd.f32 %v73, %v201
    %v203 = vpop.f32.mrb[0].mxu0
    %204 = vmatprep.mubr.f32.mxu0 0.0
    %205 = vmatmul.mubr.f32.gmra.mrb[0].mxu0 %v107
    %v206 = vpop.f32.mrb[0].mxu0
    %v207 = vadd.f32 %v78, %v206
    %v208 = vpop.f32.mrb[0].mxu0
    %209 = vmatprep.mubr.f32.mxu0 0.0
    %210 = vmatmul.mubr.f32.gmra.mrb[0].mxu0 %v110
    %v211 = vpop.f32.mrb[0].mxu0
    %v212 = vadd.f32 %v83, %v211
    %v213 = vpop.f32.mrb[0].mxu0
    %214 = vmatprep.mubr.f32.mxu0 0.0
    %215 = vmatmul.mubr.f32.gmra.mrb[0].mxu0 %v113
    %v216 = vpop.f32.mrb[0].mxu0
    %v217 = vadd.f32 %v88, %v216
    %v218 = vpop.f32.mrb[0].mxu0
    %219 = vdwg.mxu0
    %v220 = vmax.f32 %v182, 0.0
    %v221 = vmax.f32 %v187, 0.0
    %v222 = vmax.f32 %v192, 0.0
    %v223 = vmax.f32 %v197, 0.0
    %v224 = vmax.f32 %v202, 0.0
    %v225 = vmax.f32 %v207, 0.0
    %v226 = vmax.f32 %v212, 0.0
    %v227 = vmax.f32 %v217, 0.0
    %229 = vset.pattern.permute.xlu0 0
    %230 = vperm.xlu0 %229, %v44
    %v231 = vpop.permute.xlu0 %230
    %234 = vset.pattern.permute.xlu0 0
    %235 = vperm.xlu0 %234, %v45
    %v236 = vpop.permute.xlu0 %235
    %239 = vset.pattern.permute.xlu0 0
    %240 = vperm.xlu0 %239, %v46
    %v241 = vpop.permute.xlu0 %240
    %244 = vset.pattern.permute.xlu0 0
    %245 = vperm.xlu0 %244, %v47
    %v246 = vpop.permute.xlu0 %245
    %vm248 = vcmask 523264
    %v250 = vsel %vm248, %v31, 0
    %v253 = vsel %vm248, %v32, 0
    %v256 = vsel %vm248, %v33, 0
    %v259 = vsel %vm248, %v34, 0
    %261 = vmatprep.subr.mxu0 0.0
    %262 = vmatpush1.msra.mxu0 %v220
    %263 = vmatprep.subr.mxu0 0.0
    %264 = vmatpush1.msra.mxu0 %v221
    %265 = vmatprep.subr.mxu0 0.0
    %266 = vmatpush1.msra.mxu0 %v222
    %267 = vmatprep.subr.mxu0 0.0
    %268 = vmatpush1.msra.mxu0 %v223
    %269 = vmatprep.subr.mxu0 0.0
    %270 = vmatpush1.msra.mxu0 %v224
    %271 = vmatprep.subr.mxu0 0.0
    %272 = vmatpush1.msra.mxu0 %v225
    %273 = vmatprep.subr.mxu0 0.0
    %274 = vmatpush1.msra.mxu0 %v226
    %275 = vmatprep.subr.mxu0 0.0
    %276 = vmatpush1.msra.mxu0 %v227
    %277 = vmatprep.subr.mxu0 0.0
    %278 = vmatpush1.msra.mxu0 0.0
    %279 = vmatprep.subr.mxu0 0.0
    %280 = vmatpush1.msra.mxu0 0.0
    %281 = vmatprep.subr.mxu0 0.0
    %282 = vmatpush1.msra.mxu0 0.0
    %283 = vmatprep.subr.mxu0 0.0
    %284 = vmatpush1.msra.mxu0 0.0
    %285 = vmatprep.subr.mxu0 0.0
    %286 = vmatpush1.msra.mxu0 0.0
    %287 = vmatprep.subr.mxu0 0.0
    %288 = vmatpush1.msra.mxu0 0.0
    %289 = vmatprep.subr.mxu0 0.0
    %290 = vmatpush1.msra.mxu0 0.0
    %291 = vmatprep.subr.mxu0 0.0
    %292 = vmatpush1.msra.mxu0 0.0
    %293 = vmatprep.subr.mxu0 0.0
    %294 = vmatpush1.msra.mxu0 0.0
    %295 = vmatprep.subr.mxu0 0.0
    %296 = vmatpush1.msra.mxu0 0.0
    %297 = vmatprep.subr.mxu0 0.0
    %298 = vmatpush1.msra.mxu0 0.0
    %299 = vmatprep.subr.mxu0 0.0
    %300 = vmatpush1.msra.mxu0 0.0
    %301 = vmatprep.subr.mxu0 0.0
    %302 = vmatpush1.msra.mxu0 0.0
    %303 = vmatprep.subr.mxu0 0.0
    %304 = vmatpush1.msra.mxu0 0.0
    %305 = vmatprep.subr.mxu0 0.0
    %306 = vmatpush1.msra.mxu0 0.0
    %307 = vmatprep.subr.mxu0 0.0
    %308 = vmatpush1.msra.mxu0 0.0
    %309 = vmatprep.subr.mxu0 0.0
    %310 = vmatpush1.msra.mxu0 0.0
    %311 = vmatprep.subr.mxu0 0.0
    %312 = vmatpush1.msra.mxu0 0.0
    %313 = vmatprep.subr.mxu0 0.0
    %314 = vmatpush1.msra.mxu0 0.0
    %315 = vmatprep.subr.mxu0 0.0
    %316 = vmatpush1.msra.mxu0 0.0
    %317 = vmatprep.subr.mxu0 0.0
    %318 = vmatpush1.msra.mxu0 0.0
    %319 = vmatprep.subr.mxu0 0.0
    %320 = vmatpush1.msra.mxu0 0.0
    %321 = vmatprep.subr.mxu0 0.0
    %322 = vmatpush1.msra.mxu0 0.0
    %323 = vmatprep.subr.mxu0 0.0
    %324 = vmatpush1.msra.mxu0 0.0
    %325 = vmatprep.mubr.f32.mxu0 0.0
    %326 = vmatmul.mubr.f32.gmra.mrb[0].mxu0 %v250
    %v327 = vpop.f32.mrb[0].mxu0
    %v328 = vadd.f32 %v231, %v327
    %v329 = vpop.f32.mrb[0].mxu0
    %330 = vmatprep.mubr.f32.mxu0 0.0
    %331 = vmatmul.mubr.f32.gmra.mrb[0].mxu0 %v253
    %v332 = vpop.f32.mrb[0].mxu0
    %v333 = vadd.f32 %v236, %v332
    %v334 = vpop.f32.mrb[0].mxu0
    %335 = vmatprep.mubr.f32.mxu0 0.0
    %336 = vmatmul.mubr.f32.gmra.mrb[0].mxu0 %v256
    %v337 = vpop.f32.mrb[0].mxu0
    %v338 = vadd.f32 %v241, %v337
    %v339 = vpop.f32.mrb[0].mxu0
    %340 = vmatprep.mubr.f32.mxu0 0.0
    %341 = vmatmul.mubr.f32.gmra.mrb[0].mxu0 %v259
    %v342 = vpop.f32.mrb[0].mxu0
    %v343 = vadd.f32 %v246, %v342
    %v344 = vpop.f32.mrb[0].mxu0
    %345 = vdwg.mxu0
    %v346 = vmax.f32 %v328, 0.0
    %v347 = vmax.f32 %v333, 0.0
    %v348 = vmax.f32 %v338, 0.0
    %v349 = vmax.f32 %v343, 0.0
    %351 = vset.pattern.permute.xlu0 0
    %352 = vperm.xlu0 %351, %v49
    %v353 = vpop.permute.xlu0 %352
    %v356 = vlaneseq
    %v357 = vshrl.u32 %v356, 7
    %v358 = vsub.s32 0, %v357
    %v359 = vrot.slane %v22, %v358
    %v361 = vmul.f32 %v353, %v359
    %vm362 = vcmask 261120
    %v364 = vsel %vm362, %v35, 0
    %366 = vmatprep.subr.mxu0 0.0
    %367 = vmatpush1.msra.mxu0 %v346
    %368 = vmatprep.subr.mxu0 0.0
    %369 = vmatpush1.msra.mxu0 %v347
    %370 = vmatprep.subr.mxu0 0.0
    %371 = vmatpush1.msra.mxu0 %v348
    %372 = vmatprep.subr.mxu0 0.0
    %373 = vmatpush1.msra.mxu0 %v349
    %374 = vmatprep.subr.mxu0 0.0
    %375 = vmatpush1.msra.mxu0 0.0
    %376 = vmatprep.subr.mxu0 0.0
    %377 = vmatpush1.msra.mxu0 0.0
    %378 = vmatprep.subr.mxu0 0.0
    %379 = vmatpush1.msra.mxu0 0.0
    %380 = vmatprep.subr.mxu0 0.0
    %381 = vmatpush1.msra.mxu0 0.0
    %382 = vmatprep.subr.mxu0 0.0
    %383 = vmatpush1.msra.mxu0 0.0
    %384 = vmatprep.subr.mxu0 0.0
    %385 = vmatpush1.msra.mxu0 0.0
    %386 = vmatprep.subr.mxu0 0.0
    %387 = vmatpush1.msra.mxu0 0.0
    %388 = vmatprep.subr.mxu0 0.0
    %389 = vmatpush1.msra.mxu0 0.0
    %390 = vmatprep.subr.mxu0 0.0
    %391 = vmatpush1.msra.mxu0 0.0
    %392 = vmatprep.subr.mxu0 0.0
    %393 = vmatpush1.msra.mxu0 0.0
    %394 = vmatprep.subr.mxu0 0.0
    %395 = vmatpush1.msra.mxu0 0.0
    %396 = vmatprep.subr.mxu0 0.0
    %397 = vmatpush1.msra.mxu0 0.0
    %398 = vmatprep.subr.mxu0 0.0
    %399 = vmatpush1.msra.mxu0 0.0
    %400 = vmatprep.subr.mxu0 0.0
    %401 = vmatpush1.msra.mxu0 0.0
    %402 = vmatprep.subr.mxu0 0.0
    %403 = vmatpush1.msra.mxu0 0.0
    %404 = vmatprep.subr.mxu0 0.0
    %405 = vmatpush1.msra.mxu0 0.0
    %406 = vmatprep.subr.mxu0 0.0
    %407 = vmatpush1.msra.mxu0 0.0
    %408 = vmatprep.subr.mxu0 0.0
    %409 = vmatpush1.msra.mxu0 0.0
    %410 = vmatprep.subr.mxu0 0.0
    %411 = vmatpush1.msra.mxu0 0.0
    %412 = vmatprep.subr.mxu0 0.0
    %413 = vmatpush1.msra.mxu0 0.0
    %414 = vmatprep.subr.mxu0 0.0
    %415 = vmatpush1.msra.mxu0 0.0
    %416 = vmatprep.subr.mxu0 0.0
    %417 = vmatpush1.msra.mxu0 0.0
    %418 = vmatprep.subr.mxu0 0.0
    %419 = vmatpush1.msra.mxu0 0.0
    %420 = vmatprep.subr.mxu0 0.0
    %421 = vmatpush1.msra.mxu0 0.0
    %422 = vmatprep.subr.mxu0 0.0
    %423 = vmatpush1.msra.mxu0 0.0
    %424 = vmatprep.subr.mxu0 0.0
    %425 = vmatpush1.msra.mxu0 0.0
    %426 = vmatprep.subr.mxu0 0.0
    %427 = vmatpush1.msra.mxu0 0.0
    %428 = vmatprep.subr.mxu0 0.0
    %429 = vmatpush1.msra.mxu0 0.0
    %430 = vmatprep.mubr.f32.mxu0 0.0
    %431 = vmatmul.mubr.f32.gmra.mrb[0].mxu0 %v364
    %v432 = vpop.f32.mrb[0].mxu0
    %v433 = vadd.f32 %v361, %v432
    %v434 = vpop.f32.mrb[0].mxu0
    %435 = vdwg.mxu0
    %437 = vset.pattern.permute.xlu0 0
    %438 = vperm.xlu0 %437, %v48
    %v439 = vpop.permute.xlu0 %438
    %v441 = vadd.f32 %v433, %v439
    %vm442 = vcmask 58368
    %443 = vst.msk [vmem:[#allocation2] sm:$0x3] %vm442, %v441
    // Predicated region
    $region18: #{tpu_custom_call.1} parent=1 // pred_check
      _
    $region19: #{tpu_custom_call.1} parent=1 // pred_check_branch
      %445 = sbr.rel (0) target = $region21
    $region20: #{tpu_custom_call.1} parent=1 // pred_region
      %s447 = ssub.s32 32, 32
      %448 = vsyncadd [#allocation3], %s447
      %s450 = sshll.u32 [#allocation2], 4
      %s451 = int_to_ptr.vmem [resolvable:$true] %s450
      %453 = dma.vmem_to_hbm [thread:$0]  %s451, 32, %s4, [#allocation3]
    $region21: #{tpu_custom_call.1} parent=1 // pred_fallthru
      _
    // Predicated region
    $region22: #{tpu_custom_call.1} parent=1 // pred_check
      _
    $region23: #{tpu_custom_call.1} parent=1 // pred_check_branch
      %455 = sbr.rel (0) target = $region25
    $region24: #{tpu_custom_call.1} parent=1 // pred_region
      %456 = dma.done [#allocation3], 32
    $region25: #{tpu_custom_call.1} parent=1 // pred_fallthru
      _
    %457 = vsyncpa [#allocation3], 1

</llo_original>
